<compile_context>
chip_gen: v6e
topology: v6e:2x2x1
jax: 0.10.0
libtpu: 0.0.40
codegen_flags: <defaults>
</compile_context>

<pallas_src>
import math

import jax
import jax.numpy as jnp
from jax.experimental import pallas as pl
from jax.experimental.pallas import tpu as pltpu


# ----------------------------------------------------------------------------
# Materializing copy: single HBM -> HBM DMA, no VMEM staging, no TC compute.
# ----------------------------------------------------------------------------
def _dma_copy_kernel(x_hbm, o_hbm, sem):
    cp = pltpu.make_async_copy(x_hbm, o_hbm, sem)
    cp.start()
    cp.wait()


def _dma_copy(x):
    return pl.pallas_call(
        _dma_copy_kernel,
        out_shape=jax.ShapeDtypeStruct(x.shape, x.dtype),
        in_specs=[pl.BlockSpec(memory_space=pl.ANY)],
        out_specs=pl.BlockSpec(memory_space=pl.ANY),
        scratch_shapes=[pltpu.SemaphoreType.DMA],
    )(x)


def identity_passthrough(x, *, materialize=False):
    """Identity of x.

    Default (materialize=False): returns x directly — the fastest "copy" is
    no copy, per the perf review.  materialize=True returns a fresh buffer
    produced by a single HBM->HBM DMA (no VMEM staging, TensorCore idle).
    """
    if not materialize:
        return x
    return _dma_copy(x)


# ----------------------------------------------------------------------------
# Demo: tiled, VMEM-staged copy showing BlockSpec auto-pipelining with the
# review's tiling rules (2 MiB blocks, packing-aligned rows, >=4 grid steps).
# ----------------------------------------------------------------------------
def _identity_kernel(x_ref, o_ref):
    o_ref[...] = x_ref[...]


def _choose_block_rows(rows, bytes_per_row, itemsize, target_block_bytes):
    packing = max(1, 4 // max(itemsize, 1))   # 1 f32, 2 bf16, 4 int8/fp8
    align = 8 * packing                       # sublane alignment per dtype
    if rows <= align:
        return rows                           # single full-extent block (legal)
    # Cap by bytes: ~target_block_bytes per block keeps double-buffered
    # in+out footprint well inside the default scoped VMEM limit on all chips.
    cap_by_bytes = max(align,
                       (target_block_bytes // max(bytes_per_row, 1)) // align * align)
    # Cap by split: aim for >=4 grid steps so v7x's 2 TCs each get work.
    cap_by_split = max(align, (pl.cdiv(rows, 4) // align) * align)
    return min(cap_by_bytes, cap_by_split)


def tiled_copy(x, *, target_block_bytes=2 * 1024 * 1024):
    """Identity copy of x via a lane-dense tiled Pallas kernel (demo only)."""
    orig_shape = x.shape
    h = orig_shape[-1]
    rows = math.prod(orig_shape[:-1]) if len(orig_shape) > 1 else 1
    x2 = x.reshape(rows, h)

    bytes_per_row = h * x.dtype.itemsize
    block_rows = _choose_block_rows(rows, bytes_per_row, x.dtype.itemsize,
                                    target_block_bytes)
    grid = (pl.cdiv(rows, block_rows),)

    out2 = pl.pallas_call(
        _identity_kernel,
        out_shape=jax.ShapeDtypeStruct((rows, h), x.dtype),
        grid=grid,
        in_specs=[pl.BlockSpec((block_rows, h), lambda i: (i, 0))],
        out_specs=pl.BlockSpec((block_rows, h), lambda i: (i, 0)),
        compiler_params=pltpu.CompilerParams(
            dimension_semantics=("parallel",),
        ),
    )(x2)
    return out2.reshape(orig_shape)


# ----------------------------------------------------------------------------
# Module mirror.
# ----------------------------------------------------------------------------
class BertRegresser:
    """JAX/Pallas mirror of the (empty) PyTorch BertRegresser module."""

    def __init__(self, class_num=2):
        # PyTorch __init__ body is `pass`: no parameters to initialize.
        self.class_num = class_num

    def forward(self, x, output=None):
        # PyTorch forward body is `pass`: no compute, returns None.
        return None

    __call__ = forward


if __name__ == "__main__":
    key = jax.random.PRNGKey(0)
    # Small BERT-like activation shape: batch=2, seq=8, hidden=128.
    x = jax.random.normal(key, (2, 8, 128), dtype=jnp.float32)

    # 1) Default pass-through: no kernel launch, zero HBM traffic.
    y0 = identity_passthrough(x)
    assert y0 is x

    # 2) Materializing copy: single HBM->HBM DMA kernel.
    y1 = identity_passthrough(x, materialize=True)
    jax.block_until_ready(y1)
    assert y1.shape == x.shape and y1.dtype == x.dtype
    assert bool(jnp.allclose(y1, x))

    # 3) Tiled VMEM-staged copy (demonstrates the reviewed tiling rules).
    y2 = tiled_copy(x)
    jax.block_until_ready(y2)
    assert y2.shape == x.shape and y2.dtype == x.dtype
    assert bool(jnp.allclose(y2, x))

    # Module-level call matches PyTorch semantics exactly (returns None).
    model = BertRegresser(class_num=2)
    out = model(x)
    assert out is None

    print("KERNEL_OK")
</pallas_src>

<mosaic_0001>
module attributes {stable_mosaic.version = 11 : i64} {
  func.func @_dma_copy_kernel(%arg0: memref<2x8x128xf32, #tpu.memory_space<any>>, %arg1: memref<2x8x128xf32, #tpu.memory_space<any>>, %arg2: memref<!tpu.dma_semaphore, #tpu.memory_space<semaphore_mem>>) attributes {dimension_semantics = [], scalar_prefetch = 0 : i64, scratch_operands = 1 : i64, tpu.core_type = #tpu.core_type<tc>} {
    tpu.enqueue_dma source(%arg0 : memref<2x8x128xf32, #tpu.memory_space<any>>) target(%arg1 : memref<2x8x128xf32, #tpu.memory_space<any>>) target_semaphore(%arg2 : memref<!tpu.dma_semaphore, #tpu.memory_space<semaphore_mem>>)
    tpu.wait_dma2 semaphore(%arg2 : memref<!tpu.dma_semaphore, #tpu.memory_space<semaphore_mem>>) src(%arg0 : memref<2x8x128xf32, #tpu.memory_space<any>>) dst(%arg1 : memref<2x8x128xf32, #tpu.memory_space<any>>)
    return
  }
}

</mosaic_0001>

<llo_original>
// kernel: tpu_custom_call.1
$region0: #{tpu_custom_call.1}
  #allocation0 [shape = 'u32[]', space=smem, size = 0x4, offset = 0x4, fixed_abs, tag = 'smem constant byte address 0x4 - core index']
  #allocation1 [shape = 'u32[144,128]{1,0:T(1,128)}', space=vmem, size = 0x12000, scoped, tag = 'internal scratch']
  #allocation2 [shape = 's32[1]{0}', space=sflag, size = 0x4, scoped, tag = 'scratch operand']
  #allocation3 [shape = 's32[]', space=sflag, size = 0x4, offset = 0, fixed_abs, tag = 'sflag constant byte address 0x0 - dummy sync flag']
  #allocation4 [shape = 'u32[0]{0}', space=smem, size = 0, offset = 0, fixed_abs, tag = 'smem constant byte address 0x0 - null']
  %s0 = inlined_call_operand.hbm [shape: f32[2,8,128], index: 0, kind: input, shape index: {}]
  %s1 = inlined_call_operand.hbm [shape: f32[2,8,128], index: 1, kind: output, shape index: {}]
  %s2 = sld [smem:[#allocation0]]
  $region2: #{tpu_custom_call.1} parent=0
    _
  %s4 = ssub.s32 1, %s2
  %s5 = scalar_select 0, %s4, %s2
  %s7 = sshll.u32 1, 14
  %s8 = sxor.u32 4294967295, %s7
  %12 = dma.general %s0, 256, %s1, [#allocation2], 131072, [#allocation4], 0, 0
  %s13 = smul.u32 2, 8
  %s14 = smul.u32 %s13, 1
  %s15 = sshll.u32 %s14, 4
  %16 = dma.done [#allocation2], %s15
  %17 = vsyncmov [#allocation2]
  %s18 = vpop.sfrf %17
  %p19 = scmp.eq.s32.totalorder %s18, 0
  %p20 = pneg %p19
  %22 = shalt.err (%p20)

</llo_original>
